<compile_context>
chip_gen: v7x
topology: tpu7x:2x2x1
jax: 0.10.0
libtpu: 0.0.40
codegen_flags: <defaults>
</compile_context>

<pallas_src>
import jax
import jax.numpy as jnp
from jax.experimental import pallas as pl
from jax.experimental.pallas import tpu as pltpu

EPS = 1e-5      # nn.BatchNorm2d default eps
SLOPE = 0.01    # nn.LeakyReLU default negative_slope
VMEM_LIMIT = 32 * 1024 * 1024


def _lrelu(h):
    return jnp.where(h > 0, h, SLOPE * h)


def _conv1x1_rows(in_rows, w_ref, cin, cout):
    """1x1 conv as scalar-broadcast VPU MACs. in_rows: list of (1, T) f32 rows."""
    out = []
    for co in range(cout):
        acc = w_ref[0, co] * in_rows[0]
        for ci in range(1, cin):
            acc = acc + w_ref[ci, co] * in_rows[ci]
        out.append(acc)
    return out


def _bn_act_rows(rows, ab_ref, n_ch, act=True):
    """BatchNorm with prefolded per-channel scale/shift (ab_ref: (2,C) SMEM)."""
    out = []
    for c in range(n_ch):
        h = rows[c] * ab_ref[0, c] + ab_ref[1, c]
        out.append(_lrelu(h) if act else h)
    return out


def _conv3x3_rows(h_rows, w2_ref, cb, H, W, tile_m):
    """3x3 same-padded conv on the flat (y*W + x) axis: 9 shifted+masked MACs.

    Shifts wrap around the tile, but every wrapped element lands on a masked
    position, so results are exact when the tile holds whole images.
    """
    hw = H * W
    idx = jax.lax.broadcasted_iota(jnp.int32, (1, tile_m), 1)
    local = idx % hw
    yy = local // W
    xx = local % W

    shifted = {}
    for dy in range(3):
        for dx in range(3):
            conds = []
            if dy == 0:
                conds.append(yy >= 1)
            elif dy == 2:
                conds.append(yy <= H - 2)
            if dx == 0:
                conds.append(xx >= 1)
            elif dx == 2:
                conds.append(xx <= W - 2)
            cond = None
            for c in conds:
                cond = c if cond is None else (cond & c)
            shift = ((1 - dy) * W + (1 - dx)) % tile_m
            for ci in range(cb):
                # TODO(synk): jnp.roll (static slice+concat) could become a
                # single pltpu.roll XLU rotate; kept portable/unambiguous here.
                r = jnp.roll(h_rows[ci], shift, axis=1) if shift else h_rows[ci]
                if cond is not None:
                    r = jnp.where(cond, r, 0.0)
                shifted[(dy, dx, ci)] = r

    out = []
    for co in range(cb):
        acc = None
        for dy in range(3):
            for dx in range(3):
                for ci in range(cb):
                    term = w2_ref[(dy * 3 + dx) * cb + ci, co] * shifted[(dy, dx, ci)]
                    acc = term if acc is None else acc + term
        out.append(acc)
    return out


def _accum_stats(rows, s_ref, n_ch):
    """Accumulate per-channel sum / sum-of-squares into resident (2, C) output."""
    @pl.when(pl.program_id(0) == 0)
    def _():
        s_ref[...] = jnp.zeros_like(s_ref)
    for c in range(n_ch):
        r = rows[c]
        s_ref[0:1, c:c + 1] += jnp.sum(r, axis=1, keepdims=True)
        s_ref[1:2, c:c + 1] += jnp.sum(r * r, axis=1, keepdims=True)


def _fold_bn(sums, m_total, gamma, beta):
    """Plain-JAX O(C) glue: raw (sum, sum_sq) -> per-channel (scale, shift)."""
    mean = sums[0] / m_total
    var = sums[1] / m_total - mean * mean
    rstd = jax.lax.rsqrt(var + EPS)
    scale = rstd * gamma
    shift = beta - mean * scale
    return jnp.stack([scale, shift], axis=0).astype(jnp.float32)


def bottleneck_forward(x_nchw, params, skip=None):
    """x_nchw: (N, Cin, H, W) f32 -> (N, Cout, H, W) f32 (training-mode BN)."""
    w1, g1, b1, w2, g2, b2, w3, g3, b3 = params
    N, Cin, H, W = x_nchw.shape
    Cb = w1.shape[1]
    Cout = w3.shape[1]
    M = N * H * W
    hw = H * W
    # TODO(synk): stride>1 / Cin!=Cout skip path not implemented (the residual
    # add in the PyTorch module only type-checks for stride=1, Cin==Cout).
    assert hw % 128 == 0, "flat spatial extent must be lane-aligned (128)"

    if skip is None:
        skip = x_nchw

    # ---- plain-JAX layout glue: channels on sublanes, flat spatial on lanes --
    x_t = x_nchw.transpose(1, 0, 2, 3).reshape(Cin, M)
    skip_t = skip.transpose(1, 0, 2, 3).reshape(Cout, M)
    w2_flat = w2.reshape(9 * Cb, Cb)          # row = (dy*3+dx)*Cb + ci, col = co

    tile_m = hw                               # whole images per tile (toy sizes);
    grid = (M // tile_m,)                     # production: target 1-2K lanes/tile

    smem = pl.BlockSpec(memory_space=pltpu.MemorySpace.SMEM)
    x_spec = pl.BlockSpec((Cin, tile_m), lambda i: (0, i))
    t2_spec = pl.BlockSpec((Cb, tile_m), lambda i: (0, i))
    co_spec = pl.BlockSpec((Cout, tile_m), lambda i: (0, i))

    def stat_spec(c):
        # resident accumulator: same block every grid step
        return pl.BlockSpec((2, c), lambda i: (0, 0))

    cp_arb = pltpu.CompilerParams(dimension_semantics=("arbitrary",),
                                  vmem_limit_bytes=VMEM_LIMIT)
    cp_par = pltpu.CompilerParams(dimension_semantics=("parallel",),
                                  vmem_limit_bytes=VMEM_LIMIT)

    # ---- pass A: bn1 batch statistics of conv1(x) ----------------------------
    def stats1_kernel(x_ref, w1_ref, s1_ref):
        x = x_ref[...]
        rows = [x[c:c + 1, :] for c in range(Cin)]
        t1 = _conv1x1_rows(rows, w1_ref, Cin, Cb)
        _accum_stats(t1, s1_ref, Cb)

    sums1 = pl.pallas_call(
        stats1_kernel,
        grid=grid,
        in_specs=[x_spec, smem],
        out_specs=stat_spec(Cb),
        out_shape=jax.ShapeDtypeStruct((2, Cb), jnp.float32),
        compiler_params=cp_arb,
        cost_estimate=pl.CostEstimate(flops=2 * M * Cin * Cb, transcendentals=0,
                                      bytes_accessed=4 * M * Cin),
    )(x_t, w1)
    ab1 = _fold_bn(sums1, M, g1, b1)

    # ---- pass B: fused conv1 -> bn1 -> lrelu -> conv2 (in-kernel 3x3) --------
    #      writes t2 (pre-bn2) once and accumulates bn2 statistics
    def convA_kernel(x_ref, w1_ref, ab1_ref, w2_ref, t2_ref, s2_ref):
        x = x_ref[...]
        rows = [x[c:c + 1, :] for c in range(Cin)]
        t1 = _conv1x1_rows(rows, w1_ref, Cin, Cb)
        h1 = _bn_act_rows(t1, ab1_ref, Cb)              # h1 never leaves VMEM
        t2 = _conv3x3_rows(h1, w2_ref, Cb, H, W, tile_m)
        for c in range(Cb):
            t2_ref[c:c + 1, :] = t2[c]
        _accum_stats(t2, s2_ref, Cb)

    t2_arr, sums2 = pl.pallas_call(
        convA_kernel,
        grid=grid,
        in_specs=[x_spec, smem, smem, smem],
        out_specs=(t2_spec, stat_spec(Cb)),
        out_shape=(jax.ShapeDtypeStruct((Cb, M), jnp.float32),
                   jax.ShapeDtypeStruct((2, Cb), jnp.float32)),
        compiler_params=cp_arb,
        cost_estimate=pl.CostEstimate(flops=2 * M * (Cin * Cb + 9 * Cb * Cb),
                                      transcendentals=0,
                                      bytes_accessed=4 * M * (Cin + Cb)),
    )(x_t, w1, ab1, w2_flat)
    ab2 = _fold_bn(sums2, M, g2, b2)

    # ---- pass C: bn3 batch statistics of conv3(lrelu(bn2(t2))) ---------------
    def stats3_kernel(t2_ref, ab2_ref, w3_ref, s3_ref):
        t2 = t2_ref[...]
        rows = [t2[c:c + 1, :] for c in range(Cb)]
        h2 = _bn_act_rows(rows, ab2_ref, Cb)
        t3 = _conv1x1_rows(h2, w3_ref, Cb, Cout)
        _accum_stats(t3, s3_ref, Cout)

    sums3 = pl.pallas_call(
        stats3_kernel,
        grid=grid,
        in_specs=[t2_spec, smem, smem],
        out_specs=stat_spec(Cout),
        out_shape=jax.ShapeDtypeStruct((2, Cout), jnp.float32),
        compiler_params=cp_arb,
        cost_estimate=pl.CostEstimate(flops=2 * M * Cb * Cout, transcendentals=0,
                                      bytes_accessed=4 * M * Cb),
    )(t2_arr, ab2, w3)
    ab3 = _fold_bn(sums3, M, g3, b3)

    # ---- pass D: bn2 -> lrelu -> conv3 -> bn3 -> +skip -> lrelu --------------
    def final_kernel(t2_ref, skip_ref, ab2_ref, w3_ref, ab3_ref, o_ref):
        t2 = t2_ref[...]
        rows = [t2[c:c + 1, :] for c in range(Cb)]
        h2 = _bn_act_rows(rows, ab2_ref, Cb)
        t3 = _conv1x1_rows(h2, w3_ref, Cb, Cout)
        skip_v = skip_ref[...]
        for c in range(Cout):
            h = t3[c] * ab3_ref[0, c] + ab3_ref[1, c] + skip_v[c:c + 1, :]
            o_ref[c:c + 1, :] = _lrelu(h)

    out_t = pl.pallas_call(
        final_kernel,
        grid=grid,
        in_specs=[t2_spec, co_spec, smem, smem, smem],
        out_specs=co_spec,
        out_shape=jax.ShapeDtypeStruct((Cout, M), jnp.float32),
        compiler_params=cp_par,
        cost_estimate=pl.CostEstimate(flops=2 * M * Cb * Cout, transcendentals=0,
                                      bytes_accessed=4 * M * (Cb + 2 * Cout)),
    )(t2_arr, skip_t, ab2, w3, ab3)

    return out_t.reshape(Cout, N, H, W).transpose(1, 0, 2, 3)


def reference_forward(x_nchw, params):
    """Independent pure-JAX reference using lax.conv (for verification)."""
    w1, g1, b1, w2, g2, b2, w3, g3, b3 = params

    def conv(h, w_oihw, pad):
        return jax.lax.conv_general_dilated(
            h, w_oihw, window_strides=(1, 1), padding=pad,
            dimension_numbers=('NCHW', 'OIHW', 'NCHW'))

    def bn(h, g, b):
        m = jnp.mean(h, axis=(0, 2, 3), keepdims=True)
        v = jnp.mean((h - m) ** 2, axis=(0, 2, 3), keepdims=True)
        return ((h - m) * jax.lax.rsqrt(v + EPS) * g.reshape(1, -1, 1, 1)
                + b.reshape(1, -1, 1, 1))

    lrelu = lambda h: jnp.where(h > 0, h, SLOPE * h)
    skip = x_nchw
    w1_o = jnp.transpose(w1, (1, 0)).reshape(w1.shape[1], w1.shape[0], 1, 1)
    w2_o = jnp.transpose(w2, (3, 2, 0, 1))
    w3_o = jnp.transpose(w3, (1, 0)).reshape(w3.shape[1], w3.shape[0], 1, 1)
    h = lrelu(bn(conv(x_nchw, w1_o, 'VALID'), g1, b1))
    h = lrelu(bn(conv(h, w2_o, ((1, 1), (1, 1))), g2, b2))
    h = bn(conv(h, w3_o, 'VALID'), g3, b3)
    return lrelu(h + skip)


if __name__ == "__main__":
    N, H, W = 2, 16, 16
    in_channel = out_channel = 4
    Cb = out_channel // 2  # bottle_channel

    key = jax.random.PRNGKey(0)
    kx, k1, k2, k3 = jax.random.split(key, 4)
    x = jax.random.normal(kx, (N, in_channel, H, W), jnp.float32)   # NCHW

    # deterministic synthetic parameters (shapes match the nn.Module __init__)
    w1 = jax.random.normal(k1, (in_channel, Cb), jnp.float32) * 0.5      # conv1 1x1
    w2 = jax.random.normal(k2, (3, 3, Cb, Cb), jnp.float32) * 0.2        # conv2 3x3 (ky,kx,ci,co)
    w3 = jax.random.normal(k3, (Cb, out_channel), jnp.float32) * 0.5     # conv3 1x1
    g1 = jnp.ones((Cb,), jnp.float32); b1 = jnp.zeros((Cb,), jnp.float32)
    g2 = jnp.ones((Cb,), jnp.float32); b2 = jnp.zeros((Cb,), jnp.float32)
    g3 = jnp.ones((out_channel,), jnp.float32); b3 = jnp.zeros((out_channel,), jnp.float32)
    params = (w1, g1, b1, w2, g2, b2, w3, g3, b3)

    out = jax.block_until_ready(bottleneck_forward(x, params))
    ref = jax.block_until_ready(reference_forward(x, params))

    assert out.shape == (N, out_channel, H, W)
    err = float(jnp.max(jnp.abs(out - ref)))
    assert err < 2e-3, f"max abs err {err}"
    print("KERNEL_OK")
</pallas_src>

<mosaic_0001>
module attributes {stable_mosaic.version = 11 : i64} {
  func.func @stats1_kernel(%arg0: i32, %arg1: memref<4x256xf32, #tpu.memory_space<vmem>>, %arg2: memref<4x2xf32, #tpu.memory_space<smem>>, %arg3: memref<2x2xf32, #tpu.memory_space<vmem>>) attributes {dimension_semantics = [#tpu.dimension_semantics<arbitrary>], iteration_bounds = array<i64: 2>, scalar_prefetch = 0 : i64, scratch_operands = 0 : i64, tpu.core_type = #tpu.core_type<tc>, window_params = [{transform_indices = @transform_0, window_bounds = array<i64: 4, 256>}, {transform_indices = @transform_1, window_bounds = array<i64: 4, 2>}, {pipeline_mode = #tpu.pipeline_mode<synchronous>, transform_indices = @transform_2, window_bounds = array<i64: 2, 2>}]} {
    %c0 = arith.constant 0 : index
    %c0_0 = arith.constant 0 : index
    %0 = vector.load %arg1[%c0, %c0_0] : memref<4x256xf32, #tpu.memory_space<vmem>>, vector<4x256xf32>
    %1 = vector.extract_strided_slice %0 {offsets = [0, 0], sizes = [1, 256], strides = [1, 1]} : vector<4x256xf32> to vector<1x256xf32>
    %2 = vector.extract_strided_slice %0 {offsets = [1, 0], sizes = [1, 256], strides = [1, 1]} : vector<4x256xf32> to vector<1x256xf32>
    %3 = vector.extract_strided_slice %0 {offsets = [2, 0], sizes = [1, 256], strides = [1, 1]} : vector<4x256xf32> to vector<1x256xf32>
    %4 = vector.extract_strided_slice %0 {offsets = [3, 0], sizes = [1, 256], strides = [1, 1]} : vector<4x256xf32> to vector<1x256xf32>
    %c0_1 = arith.constant 0 : index
    %c0_2 = arith.constant 0 : index
    %5 = memref.load %arg2[%c0_1, %c0_2] : memref<4x2xf32, #tpu.memory_space<smem>>
    %6 = vector.broadcast %5 : f32 to vector<1x256xf32>
    %7 = arith.mulf %6, %1 : vector<1x256xf32>
    %c1 = arith.constant 1 : index
    %c0_3 = arith.constant 0 : index
    %8 = memref.load %arg2[%c1, %c0_3] : memref<4x2xf32, #tpu.memory_space<smem>>
    %9 = vector.broadcast %8 : f32 to vector<1x256xf32>
    %10 = arith.mulf %9, %2 : vector<1x256xf32>
    %11 = arith.addf %7, %10 : vector<1x256xf32>
    %c2 = arith.constant 2 : index
    %c0_4 = arith.constant 0 : index
    %12 = memref.load %arg2[%c2, %c0_4] : memref<4x2xf32, #tpu.memory_space<smem>>
    %13 = vector.broadcast %12 : f32 to vector<1x256xf32>
    %14 = arith.mulf %13, %3 : vector<1x256xf32>
    %15 = arith.addf %11, %14 : vector<1x256xf32>
    %c3 = arith.constant 3 : index
    %c0_5 = arith.constant 0 : index
    %16 = memref.load %arg2[%c3, %c0_5] : memref<4x2xf32, #tpu.memory_space<smem>>
    %17 = vector.broadcast %16 : f32 to vector<1x256xf32>
    %18 = arith.mulf %17, %4 : vector<1x256xf32>
    %19 = arith.addf %15, %18 : vector<1x256xf32>
    %c0_6 = arith.constant 0 : index
    %c1_7 = arith.constant 1 : index
    %20 = memref.load %arg2[%c0_6, %c1_7] : memref<4x2xf32, #tpu.memory_space<smem>>
    %21 = vector.broadcast %20 : f32 to vector<1x256xf32>
    %22 = arith.mulf %21, %1 : vector<1x256xf32>
    %c1_8 = arith.constant 1 : index
    %c1_9 = arith.constant 1 : index
    %23 = memref.load %arg2[%c1_8, %c1_9] : memref<4x2xf32, #tpu.memory_space<smem>>
    %24 = vector.broadcast %23 : f32 to vector<1x256xf32>
    %25 = arith.mulf %24, %2 : vector<1x256xf32>
    %26 = arith.addf %22, %25 : vector<1x256xf32>
    %c2_10 = arith.constant 2 : index
    %c1_11 = arith.constant 1 : index
    %27 = memref.load %arg2[%c2_10, %c1_11] : memref<4x2xf32, #tpu.memory_space<smem>>
    %28 = vector.broadcast %27 : f32 to vector<1x256xf32>
    %29 = arith.mulf %28, %3 : vector<1x256xf32>
    %30 = arith.addf %26, %29 : vector<1x256xf32>
    %c3_12 = arith.constant 3 : index
    %c1_13 = arith.constant 1 : index
    %31 = memref.load %arg2[%c3_12, %c1_13] : memref<4x2xf32, #tpu.memory_space<smem>>
    %32 = vector.broadcast %31 : f32 to vector<1x256xf32>
    %33 = arith.mulf %32, %4 : vector<1x256xf32>
    %34 = arith.addf %30, %33 : vector<1x256xf32>
    %c0_i32 = arith.constant 0 : i32
    %35 = arith.cmpi eq, %arg0, %c0_i32 : i32
    %36 = arith.extui %35 : i1 to i32
    %c0_i32_14 = arith.constant 0 : i32
    %37 = arith.cmpi ne, %36, %c0_i32_14 : i32
    scf.if %37 {
      %cst_34 = arith.constant 0.000000e+00 : f32
      %60 = vector.broadcast %cst_34 : f32 to vector<2x2xf32>
      %c0_35 = arith.constant 0 : index
      %c0_36 = arith.constant 0 : index
      %61 = vector.load %arg3[%c0_35, %c0_36] : memref<2x2xf32, #tpu.memory_space<vmem>>, vector<2x2xf32>
      tpu.vector_store %arg3[%c0_35, %c0_36], %60 {strides = array<i32>} : memref<2x2xf32, #tpu.memory_space<vmem>>, vector<2x2xf32>,
    } else {
    }
    %c0_15 = arith.constant 0 : index
    %c0_16 = arith.constant 0 : index
    %38 = vector.load %arg3[%c0_15, %c0_16] : memref<2x2xf32, #tpu.memory_space<vmem>>, vector<1x1xf32>
    %cst = arith.constant dense<0.000000e+00> : vector<1xf32>
    %39 = vector.multi_reduction <add>, %19, %cst [1] : vector<1x256xf32> to vector<1xf32>
    %40 = vector.shape_cast %39 : vector<1xf32> to vector<1x1xf32>
    %41 = arith.addf %38, %40 : vector<1x1xf32>
    %c0_17 = arith.constant 0 : index
    %c0_18 = arith.constant 0 : index
    %42 = vector.load %arg3[%c0_17, %c0_18] : memref<2x2xf32, #tpu.memory_space<vmem>>, vector<1x1xf32>
    tpu.vector_store %arg3[%c0_17, %c0_18], %41 {strides = array<i32>} : memref<2x2xf32, #tpu.memory_space<vmem>>, vector<1x1xf32>,
    %c1_19 = arith.constant 1 : index
    %c0_20 = arith.constant 0 : index
    %43 = vector.load %arg3[%c1_19, %c0_20] : memref<2x2xf32, #tpu.memory_space<vmem>>, vector<1x1xf32>
    %44 = arith.mulf %19, %19 : vector<1x256xf32>
    %cst_21 = arith.constant dense<0.000000e+00> : vector<1xf32>
    %45 = vector.multi_reduction <add>, %44, %cst_21 [1] : vector<1x256xf32> to vector<1xf32>
    %46 = vector.shape_cast %45 : vector<1xf32> to vector<1x1xf32>
    %47 = arith.addf %43, %46 : vector<1x1xf32>
    %c1_22 = arith.constant 1 : index
    %c0_23 = arith.constant 0 : index
    %48 = vector.load %arg3[%c1_22, %c0_23] : memref<2x2xf32, #tpu.memory_space<vmem>>, vector<1x1xf32>
    tpu.vector_store %arg3[%c1_22, %c0_23], %47 {strides = array<i32>} : memref<2x2xf32, #tpu.memory_space<vmem>>, vector<1x1xf32>,
    %c0_24 = arith.constant 0 : index
    %c1_25 = arith.constant 1 : index
    %49 = vector.load %arg3[%c0_24, %c1_25] : memref<2x2xf32, #tpu.memory_space<vmem>>, vector<1x1xf32>
    %cst_26 = arith.constant dense<0.000000e+00> : vector<1xf32>
    %50 = vector.multi_reduction <add>, %34, %cst_26 [1] : vector<1x256xf32> to vector<1xf32>
    %51 = vector.shape_cast %50 : vector<1xf32> to vector<1x1xf32>
    %52 = arith.addf %49, %51 : vector<1x1xf32>
    %c0_27 = arith.constant 0 : index
    %c1_28 = arith.constant 1 : index
    %53 = vector.load %arg3[%c0_27, %c1_28] : memref<2x2xf32, #tpu.memory_space<vmem>>, vector<1x1xf32>
    tpu.vector_store %arg3[%c0_27, %c1_28], %52 {strides = array<i32>} : memref<2x2xf32, #tpu.memory_space<vmem>>, vector<1x1xf32>,
    %c1_29 = arith.constant 1 : index
    %c1_30 = arith.constant 1 : index
    %54 = vector.load %arg3[%c1_29, %c1_30] : memref<2x2xf32, #tpu.memory_space<vmem>>, vector<1x1xf32>
    %55 = arith.mulf %34, %34 : vector<1x256xf32>
    %cst_31 = arith.constant dense<0.000000e+00> : vector<1xf32>
    %56 = vector.multi_reduction <add>, %55, %cst_31 [1] : vector<1x256xf32> to vector<1xf32>
    %57 = vector.shape_cast %56 : vector<1xf32> to vector<1x1xf32>
    %58 = arith.addf %54, %57 : vector<1x1xf32>
    %c1_32 = arith.constant 1 : index
    %c1_33 = arith.constant 1 : index
    %59 = vector.load %arg3[%c1_32, %c1_33] : memref<2x2xf32, #tpu.memory_space<vmem>>, vector<1x1xf32>
    tpu.vector_store %arg3[%c1_32, %c1_33], %58 {strides = array<i32>} : memref<2x2xf32, #tpu.memory_space<vmem>>, vector<1x1xf32>,
    return
  }
  func.func @transform_0(%arg0: i32) -> (i32, i32) {
    %c0_i32 = arith.constant 0 : i32
    %c0_i32_0 = arith.constant 0 : i32
    return %c0_i32, %arg0 : i32, i32
  }
  func.func @transform_1(%arg0: i32) -> (i32, i32) {
    %c0_i32 = arith.constant 0 : i32
    %c0_i32_0 = arith.constant 0 : i32
    %c0_i32_1 = arith.constant 0 : i32
    return %c0_i32, %c0_i32_0 : i32, i32
  }
  func.func @transform_2(%arg0: i32) -> (i32, i32) {
    %c0_i32 = arith.constant 0 : i32
    %c0_i32_0 = arith.constant 0 : i32
    %c0_i32_1 = arith.constant 0 : i32
    return %c0_i32, %c0_i32_0 : i32, i32
  }
}

</mosaic_0001>

<llo_original>
// kernel: tpu_custom_call.1
$region0: #{tpu_custom_call.1}
  #allocation0 [shape = 'u32[]', space=smem, size = 0x4, offset = 0x4, fixed_abs, tag = 'smem constant byte address 0x4 - core index']
  #allocation1 [shape = 'u32[144,128]{1,0:T(1,128)}', space=vmem, size = 0x12000, scoped, tag = 'internal scratch']
  %s0 = inlined_call_operand.hbm [shape: f32[4,512], index: 0, kind: input, shape index: {}]
  %s1 = inlined_call_operand.vmem [shape: f32[4,2], index: 1, kind: input, shape index: {}]
  %s2 = inlined_call_operand.hbm [shape: f32[2,2], index: 2, kind: output, shape index: {}]
  %s3 = sld [smem:[#allocation0]]
  $region53: #{tpu_custom_call.1} parent=0
    _
  %s5 = ssub.s32 1, %s3
  %s6 = scalar_select 0, %s5, %s3
  $region1: #{tpu_custom_call.1} parent=0
    #allocation2 [shape = 'u8[8192]{0}', space=vmem, size = 0x2000, scoped, tag = 'input window, operand 0']
    #allocation3 [shape = 's32[2]{0}', space=sflag, size = 0x8, scoped, tag = 'scoped memory for tpu_custom_call.1']
    #allocation4 [shape = 's32[2]{0}', space=sflag, size = 0x8, scoped, tag = 'scoped memory for tpu_custom_call.1']
    #allocation5 [shape = 's32[2]{0}', space=sflag, size = 0x8, scoped, tag = 'scoped memory for tpu_custom_call.1']
    #allocation6 [shape = 'u8[2048]{0}', space=smem, size = 0x800, scoped, tag = 'input window, operand 1, single buffered']
    #allocation7 [shape = 'u8[1024]{0}', space=vmem, size = 0x400, scoped, tag = 'output window, operand 0, single buffered']
    %7 = vsyncpa [#allocation3], 0
    %s8 = scalar_lea.sflag [#allocation3], 1
    %9 = vsyncpa %s8, 0
    %10 = vsyncpa [#allocation5], 0
    %11 = vsyncpa [#allocation4], 0
    loop: start=0, step=1, limit=4
    $region2: #{tpu_custom_call.1} parent=1 // loop_pre_header
      _
    $region3: #{tpu_custom_call.1} parent=1 // loop_header
      %s13 = sphi 0, %s17
      %p14 = scmp.ge.s32.totalorder %s13, 4
      %s23 = sphi 0, %s25
      %s26 = sphi 0, %s23
      %s27 = sphi 0, %s26
      %s43 = sphi 0, %s27
      %s47 = sphi 0, %s47
      %s49 = sphi 0, %s47
      %s50 = sphi 0, %s49
      %s64 = sphi 0, %s50
      %s68 = sphi 0, %s68
      %s70 = sphi 0, %s68
      %s71 = sphi 0, %s70
      %s85 = sphi 0, %s71
    $region4: #{tpu_custom_call.1} parent=1 // loop_header_branch
      %16 = sbr.rel (%p14) target = $region8
    $region5: #{tpu_custom_call.1} parent=1 // loop_body
      %s18 = ssub.s32 %s13, 1
      %s19 = ssub.s32 %s13, 2
      %s20 = sadd.s32 %s13, 1
      %s21 = ssub.s32 %s13, %s20
      %p22 = scmp.eq.s32.totalorder %s21, 0
      %s24 = sadd.s32 %s23, 1
      %s25 = scalar_select %p22, %s23, %s24
      %p28 = pneg %p22
      %p29 = scmp.eq.s32.totalorder %s13, 1
      %p30 = por %p28, %p29
      %p31 = scmp.ne.s32.totalorder %s23, %s26
      %p32 = scmp.eq.s32.totalorder %s13, 0
      %p33 = por %p31, %p32
      %p34 = scmp.ne.s32.totalorder %s23, %s26
      %p35 = scmp.eq.s32.totalorder %s18, 1
      %p36 = por %p34, %p35
      %p37 = scmp.ne.s32.totalorder %s26, %s27
      %p38 = scmp.eq.s32.totalorder %s18, 0
      %p39 = por %p37, %p38
      %p40 = scmp.ne.s32.totalorder %s26, %s27
      %p41 = scmp.eq.s32.totalorder %s19, 1
      %p42 = por %p40, %p41
      %p44 = scmp.ne.s32.totalorder %s27, %s43
      %p45 = scmp.eq.s32.totalorder %s19, 0
      %p46 = por %p44, %p45
      %s48 = sadd.s32 %s47, 1
      %p51 = scmp.eq.s32.totalorder %s13, 1
      %p52 = scmp.ne.s32.totalorder %s47, %s49
      %p53 = scmp.eq.s32.totalorder %s13, 0
      %p54 = por %p52, %p53
      %p55 = scmp.ne.s32.totalorder %s47, %s49
      %p56 = scmp.eq.s32.totalorder %s18, 1
      %p57 = por %p55, %p56
      %p58 = scmp.ne.s32.totalorder %s49, %s50
      %p59 = scmp.eq.s32.totalorder %s18, 0
      %p60 = por %p58, %p59
      %p61 = scmp.ne.s32.totalorder %s49, %s50
      %p62 = scmp.eq.s32.totalorder %s19, 1
      %p63 = por %p61, %p62
      %p65 = scmp.ne.s32.totalorder %s50, %s64
      %p66 = scmp.eq.s32.totalorder %s19, 0
      %p67 = por %p65, %p66
      %s69 = sadd.s32 %s68, 1
      %p72 = scmp.eq.s32.totalorder %s13, 1
      %p73 = scmp.ne.s32.totalorder %s68, %s70
      %p74 = scmp.eq.s32.totalorder %s13, 0
      %p75 = por %p73, %p74
      %p76 = scmp.ne.s32.totalorder %s68, %s70
      %p77 = scmp.eq.s32.totalorder %s18, 1
      %p78 = por %p76, %p77
      %p79 = scmp.ne.s32.totalorder %s70, %s71
      %p80 = scmp.eq.s32.totalorder %s18, 0
      %p81 = por %p79, %p80
      %p82 = scmp.ne.s32.totalorder %s70, %s71
      %p83 = scmp.eq.s32.totalorder %s19, 1
      %p84 = por %p82, %p83
      %p86 = scmp.ne.s32.totalorder %s71, %s85
      %p87 = scmp.eq.s32.totalorder %s19, 0
      %p88 = por %p86, %p87
      %p89 = scmp.le.s32.totalorder 1, %s13
      %p90 = scmp.lt.s32.totalorder %s13, 3
      %p91 = pnand %p89, %p90
      %p92 = pneg %p91
      // Predicated region
      $region9: #{tpu_custom_call.1} parent=5 // pred_check
        _
      $region10: #{tpu_custom_call.1} parent=5 // pred_check_branch
        %94 = sbr.rel (%p91) target = $region12
      $region11: #{tpu_custom_call.1} parent=5 // pred_region
        %s95 = ssub.s32 %s13, 1
        // Predicated region
        $region13: #{tpu_custom_call.1} parent=11 // pred_check
          %p96 = pneg %p60
        $region14: #{tpu_custom_call.1} parent=11 // pred_check_branch
          %98 = sbr.rel (%p96) target = $region16
        $region15: #{tpu_custom_call.1} parent=11 // pred_region
          %s100 = ssub.s32 64, 64
          %101 = vsyncadd [#allocation5], %s100
          %s103 = sshll.u32 %s1, 4
          %s104 = int_to_ptr.vmem [resolvable:$true] %s103
          %106 = dma.vmem_to_smem %s104, 64, [#allocation6], [#allocation5]
        $region16: #{tpu_custom_call.1} parent=11 // pred_fallthru
          _
      $region12: #{tpu_custom_call.1} parent=5 // pred_fallthru
        _
      %p107 = scmp.lt.s32.totalorder %s13, 2
      // Predicated region
      $region17: #{tpu_custom_call.1} parent=5 // pred_check
        %p108 = pneg %p107
      $region18: #{tpu_custom_call.1} parent=5 // pred_check_branch
        %110 = sbr.rel (%p108) target = $region20
      $region19: #{tpu_custom_call.1} parent=5 // pred_region
        // Predicated region
        $region21: #{tpu_custom_call.1} parent=19 // pred_check
          %p111 = pneg %p33
        $region22: #{tpu_custom_call.1} parent=19 // pred_check_branch
          %113 = sbr.rel (%p111) target = $region24
        $region23: #{tpu_custom_call.1} parent=19 // pred_region
          %s114 = sand.u32 %s23, 1
          %s115 = scalar_lea.sflag [#allocation3], %s114
          %s116 = sand.u32 %s23, 1
          %s117 = smul.addr %s116, 8
          %s118 = scalar_lea.vmem [#allocation2], %s117
          %s119 = smul.u32 2, %s13
          %s121 = ssub.s32 128, 128
          %122 = vsyncadd %s115, %s121
          %s123 = smul.addr %s119, 64
          %s124 = scalar_lea.hbm %s0, %s123
          %s126 = sshll.u32 %s118, 4
          %s127 = int_to_ptr.vmem [resolvable:$true] %s126
          %129 = dma.hbm_to_vmem [thread:$0]  %s124, 128, %s127, %s115
        $region24: #{tpu_custom_call.1} parent=19 // pred_fallthru
          _
      $region20: #{tpu_custom_call.1} parent=5 // pred_fallthru
        _
      %p130 = scmp.le.s32.totalorder 1, %s13
      %p131 = scmp.lt.s32.totalorder %s13, 3
      %p132 = pnand %p130, %p131
      %p133 = pneg %p132
      // Predicated region
      $region25: #{tpu_custom_call.1} parent=5 // pred_check
        _
      $region26: #{tpu_custom_call.1} parent=5 // pred_check_branch
        %135 = sbr.rel (%p132) target = $region28
      $region27: #{tpu_custom_call.1} parent=5 // pred_region
        %s136 = ssub.s32 %s13, 1
        %s137 = sand.u32 %s26, 1
        %s138 = scalar_lea.sflag [#allocation3], %s137
        %s139 = sand.u32 %s26, 1
        %s140 = smul.addr %s139, 8
        %s141 = scalar_lea.vmem [#allocation2], %s140
        // Predicated region
        $region29: #{tpu_custom_call.1} parent=27 // pred_check
          %p142 = pneg %p39
        $region30: #{tpu_custom_call.1} parent=27 // pred_check_branch
          %144 = sbr.rel (%p142) target = $region32
        $region31: #{tpu_custom_call.1} parent=27 // pred_region
          %145 = dma.done %s138, 128
        $region32: #{tpu_custom_call.1} parent=27 // pred_fallthru
          _
        // Predicated region
        $region33: #{tpu_custom_call.1} parent=27 // pred_check
          %p146 = pneg %p60
        $region34: #{tpu_custom_call.1} parent=27 // pred_check_branch
          %148 = sbr.rel (%p146) target = $region36
        $region35: #{tpu_custom_call.1} parent=27 // pred_region
          %149 = dma.done [#allocation5], 64
        $region36: #{tpu_custom_call.1} parent=27 // pred_fallthru
          _
        %150 = sfence
        %s151 = sand.u32 %s26, 1
        %s152 = scalar_lea.sflag [#allocation3], %s151
        %s153 = sand.u32 %s26, 1
        %s154 = smul.addr %s153, 8
        %s155 = scalar_lea.vmem [#allocation2], %s154
        %p156 = pneg %p39
        %p157 = pneg %p36
        %p158 = pneg %p60
        %p159 = pneg %p57
        %p160 = pneg %p81
        %p161 = pneg %p78
        %s162 = smul.u32 2, %s18
        %v163 = vld [vmem:[%s141] sm:$0xff]
        %s164 = sld [smem:[#allocation6]]
        %v165 = vstv %s164
        %v166 = vmul.f32 %v165, %v163
        %s167 = sld [smem:[#allocation6 + $0x80]]
        %v168 = vstv %s167
        %v169 = vmul.f32 %v168, %v163
        %v171 = vrot.slane %v169, 5
        %v172 = vrot.slane %v171, 4
        %v174 = vadd.f32 %v166, %v172
        %s175 = sld [smem:[#allocation6 + $0x100]]
        %v176 = vstv %s175
        %v177 = vmul.f32 %v176, %v163
        %v179 = vrot.slane %v177, 6
        %v180 = vrot.slane %v179, 4
        %v182 = vadd.f32 %v174, %v180
        %s183 = sld [smem:[#allocation6 + $0x180]]
        %v184 = vstv %s183
        %v185 = vmul.f32 %v184, %v163
        %v187 = vrot.slane %v185, 7
        %v188 = vrot.slane %v187, 4
        %v190 = vadd.f32 %v182, %v188
        %s191 = sld [smem:[#allocation6 + $0x1]]
        %v192 = vstv %s191
        %v193 = vmul.f32 %v192, %v163
        %s194 = sld [smem:[#allocation6 + $0x81]]
        %v195 = vstv %s194
        %v196 = vmul.f32 %v195, %v163
        %v198 = vrot.slane %v196, 5
        %v199 = vrot.slane %v198, 4
        %v201 = vadd.f32 %v193, %v199
        %s202 = sld [smem:[#allocation6 + $0x101]]
        %v203 = vstv %s202
        %v204 = vmul.f32 %v203, %v163
        %v206 = vrot.slane %v204, 6
        %v207 = vrot.slane %v206, 4
        %v209 = vadd.f32 %v201, %v207
        %s210 = sld [smem:[#allocation6 + $0x181]]
        %v211 = vstv %s210
        %v212 = vmul.f32 %v211, %v163
        %v214 = vrot.slane %v212, 7
        %v215 = vrot.slane %v214, 4
        %v217 = vadd.f32 %v209, %v215
        %p218 = scmp.eq.s32.totalorder %s18, 0
        // Predicated region
        $region37: #{tpu_custom_call.1} parent=27 // pred_check
          %p219 = pneg %p218
        $region38: #{tpu_custom_call.1} parent=27 // pred_check_branch
          %221 = sbr.rel (%p219) target = $region40
        $region39: #{tpu_custom_call.1} parent=27 // pred_region
          %vm222 = vcmask 9216
          %223 = vst.msk [vmem:[#allocation7] sm:$0x3] %vm222, 0.0
        $region40: #{tpu_custom_call.1} parent=27 // pred_fallthru
          _
        %v224 = vld [vmem:[#allocation7] sm:$0x1]
        %v226 = vlaneseq
        %v227 = vshrl.u32 %v226, 7
        %v228 = vsub.s32 0, %v227
        %v229 = vrot.slane %v190, %v228
        %v230 = vlaneseq
        %v231 = vshrl.u32 %v230, 7
        %v232 = vsub.s32 4, %v231
        %v233 = vrot.slane %v190, %v232
        %vm236 = vcmask 1040384
        %v237 = vsel %vm236, %v229, 0.0
        %v238 = vsel %vm236, %v233, 0.0
        %v239 = vadd.f32 %v237, %v238
        %240 = vadd.xlane.f32.xlu0 %v239
        %v241 = vpop.xlane.xlu0 %240
        %v242 = vadd.f32 %v224, %v241
        %vm243 = vcmask 0
        %244 = vst.msk [vmem:[#allocation7] sm:$0x1] %vm243, %v242
        %v245 = vld [vmem:[#allocation7 + $0x1] sm:$0x1]
        %v246 = vmul.f32 %v190, %v190
        %v248 = vlaneseq
        %v249 = vshrl.u32 %v248, 7
        %v250 = vsub.s32 0, %v249
        %v251 = vrot.slane %v246, %v250
        %v252 = vlaneseq
        %v253 = vshrl.u32 %v252, 7
        %v254 = vsub.s32 4, %v253
        %v255 = vrot.slane %v246, %v254
        %v258 = vsel %vm236, %v251, 0.0
        %v259 = vsel %vm236, %v255, 0.0
        %v260 = vadd.f32 %v258, %v259
        %261 = vadd.xlane.f32.xlu0 %v260
        %v262 = vpop.xlane.xlu0 %261
        %v263 = vadd.f32 %v245, %v262
        %264 = vst.msk [vmem:[#allocation7 + $0x1] sm:$0x1] %vm243, %v263
        %v265 = vld [vmem:[#allocation7] sm:$0x1]
        %v267 = vlaneseq
        %v268 = vshrl.u32 %v267, 7
        %v269 = vsub.s32 0, %v268
        %v270 = vrot.slane %v217, %v269
        %v271 = vlaneseq
        %v272 = vshrl.u32 %v271, 7
        %v273 = vsub.s32 4, %v272
        %v274 = vrot.slane %v217, %v273
        %v277 = vsel %vm236, %v270, 0.0
        %v278 = vsel %vm236, %v274, 0.0
        %v279 = vadd.f32 %v277, %v278
        %280 = vadd.xlane.f32.xlu0 %v279
        %v281 = vpop.xlane.xlu0 %280
        %v282 = vadd.f32 %v265, %v281
        %vm283 = vcmask 8200
        %284 = vst.msk [vmem:[#allocation7] sm:$0x1] %vm283, %v282
        %v285 = vld [vmem:[#allocation7 + $0x1] sm:$0x1]
        %v286 = vmul.f32 %v217, %v217
        %v288 = vlaneseq
        %v289 = vshrl.u32 %v288, 7
        %v290 = vsub.s32 0, %v289
        %v291 = vrot.slane %v286, %v290
        %v292 = vlaneseq
        %v293 = vshrl.u32 %v292, 7
        %v294 = vsub.s32 4, %v293
        %v295 = vrot.slane %v286, %v294
        %v298 = vsel %vm236, %v291, 0.0
        %v299 = vsel %vm236, %v295, 0.0
        %v300 = vadd.f32 %v298, %v299
        %301 = vadd.xlane.f32.xlu0 %v300
        %v302 = vpop.xlane.xlu0 %301
        %v303 = vadd.f32 %v285, %v302
        %304 = vst.msk [vmem:[#allocation7 + $0x1] sm:$0x1] %vm283, %v303
        // Predicated region
        $region41: #{tpu_custom_call.1} parent=27 // pred_check
          %p305 = pneg %p78
        $region42: #{tpu_custom_call.1} parent=27 // pred_check_branch
          %307 = sbr.rel (%p305) target = $region44
        $region43: #{tpu_custom_call.1} parent=27 // pred_region
          %s309 = ssub.s32 32, 32
          %310 = vsyncadd [#allocation4], %s309
          %s312 = sshll.u32 [#allocation7], 4
          %s313 = int_to_ptr.vmem [resolvable:$true] %s312
          %315 = dma.vmem_to_hbm [thread:$0]  %s313, 32, %s2, [#allocation4]
        $region44: #{tpu_custom_call.1} parent=27 // pred_fallthru
          _
        // Predicated region
        $region45: #{tpu_custom_call.1} parent=27 // pred_check
          %p316 = pneg %p78
        $region46: #{tpu_custom_call.1} parent=27 // pred_check_branch
          %318 = sbr.rel (%p316) target = $region48
        $region47: #{tpu_custom_call.1} parent=27 // pred_region
          %319 = dma.done [#allocation4], 32
        $region48: #{tpu_custom_call.1} parent=27 // pred_fallthru
          _
      $region28: #{tpu_custom_call.1} parent=5 // pred_fallthru
        _
      %p320 = scmp.le.s32.totalorder 2, %s13
      // Predicated region
      $region49: #{tpu_custom_call.1} parent=5 // pred_check
        %p321 = pneg %p320
      $region50: #{tpu_custom_call.1} parent=5 // pred_check_branch
        %323 = sbr.rel (%p321) target = $region52
      $region51: #{tpu_custom_call.1} parent=5 // pred_region
        %s324 = ssub.s32 %s13, 2
      $region52: #{tpu_custom_call.1} parent=5 // pred_fallthru
        _
    $region6: #{tpu_custom_call.1} parent=1 // loop_footer
      %s17 = sadd.s32 1, %s13
    $region7: #{tpu_custom_call.1} parent=1 // loop_footer_branch
      %12 = sbr.rel target = $region3
    $region8: #{tpu_custom_call.1} parent=1 // loop_exit
      _
    %325 = vsyncpa [#allocation3], 1
    %s326 = scalar_lea.sflag [#allocation3], 1
    %327 = vsyncpa %s326, 1
    %328 = vsyncpa [#allocation4], 1
    %s329 = scalar_lea.sflag [#allocation4], 1
    %330 = vsyncpa %s329, 1
    %331 = vsyncpa [#allocation5], 1
    %s332 = scalar_lea.sflag [#allocation5], 1
    %333 = vsyncpa %s332, 1

</llo_original>
